<compile_context>
chip_gen: v6e
topology: v6e:2x2x1
jax: 0.10.0
libtpu: 0.0.40
codegen_flags: <defaults>
</compile_context>

<pallas_src>
import functools

import jax
import jax.numpy as jnp
from jax.experimental import pallas as pl
from jax.experimental.pallas import tpu as pltpu


def _round_up(x, m):
    return (x + m - 1) // m * m


def _mlb_fusion_kernel(x_ref, w_ref, b_ref, o_ref, *, half):
    # One fused MXU pass:  [x_v | x_q] @ blockdiag(Wv, Wq)  ->  (TM, 2*half)
    slab = jnp.dot(x_ref[...], w_ref[...], preferred_element_type=jnp.float32)
    # Bias add (VPU) + tanh (EUP), both halves at once.
    slab = jnp.tanh(slab + b_ref[...])
    # Swap the two halves with an XLU lane rotate so the elementwise product
    # fills every lane (lane-dense, unmasked stores):
    #   slab         = [ tanh(vWv+bv) | tanh(qWq+bq) ]
    #   rolled       = [ tanh(qWq+bq) | tanh(vWv+bv) ]
    #   slab*rolled  = [  x_v * x_q   |  x_q * x_v   ]   (duplicated product)
    rolled = pltpu.roll(slab, shift=half, axis=1)
    o_ref[...] = (slab * rolled).astype(o_ref.dtype)


def mlb_fusion(input_v, input_q, w_v, b_v, w_q, b_q, *, block_b=256):
    """MLBFusion forward.

    input_v: (B, dim_v), input_q: (B, dim_q)
    w_v: (dim_v, dim_h), w_q: (dim_q, dim_h)   (pre-transposed vs. torch layout)
    b_v, b_q: (dim_h,)
    Returns (B, dim_h) = tanh(v@Wv + bv) * tanh(q@Wq + bq).
    """
    B, dim_v = input_v.shape
    Bq, dim_q = input_q.shape
    assert Bq == B
    dim_h = w_v.shape[1]
    dtype = input_v.dtype

    # Padded problem sizes.
    K = dim_v + dim_q                    # fused contraction dim
    KP = _round_up(K, 8)                 # clean sublane tiling
    HP = _round_up(dim_h, 64)            # per-branch width; 2*HP % 128 == 0
    N = 2 * HP                           # lane-dense fused output width

    # Batch tile (multiple of 8) and padded batch.
    tm = min(_round_up(block_b, 8), _round_up(B, 8))
    BP = _round_up(B, tm)

    # Block-diagonal fused weight (built once per call here; in a real model
    # this is precomputed at parameter-load time).
    W = jnp.zeros((KP, N), dtype)
    W = W.at[:dim_v, :dim_h].set(w_v.astype(dtype))
    W = W.at[dim_v:dim_v + dim_q, HP:HP + dim_h].set(w_q.astype(dtype))

    # Fused bias row [b_v | b_q] (padding lanes stay 0 -> tanh(0)=0 -> sliced off).
    Bias = jnp.zeros((1, N), jnp.float32)
    Bias = Bias.at[0, :dim_h].set(b_v.astype(jnp.float32))
    Bias = Bias.at[0, HP:HP + dim_h].set(b_q.astype(jnp.float32))

    # Fused activations [input_v | input_q | 0-pad], batch-padded.
    X = jnp.zeros((BP, KP), dtype)
    X = X.at[:B, :dim_v].set(input_v)
    X = X.at[:B, dim_v:dim_v + dim_q].set(input_q)

    kernel = functools.partial(_mlb_fusion_kernel, half=HP)

    out_padded = pl.pallas_call(
        kernel,
        out_shape=jax.ShapeDtypeStruct((BP, N), dtype),
        grid=(BP // tm,),
        in_specs=[
            pl.BlockSpec((tm, KP), lambda i: (i, 0)),   # batch-tiled activations
            pl.BlockSpec((KP, N), lambda i: (0, 0)),    # weights resident in VMEM
            pl.BlockSpec((1, N), lambda i: (0, 0)),     # fused bias resident
        ],
        out_specs=pl.BlockSpec((tm, N), lambda i: (i, 0)),
        compiler_params=pltpu.CompilerParams(
            # Batch axis is embarrassingly parallel -> shard across v7x's 2 TCs.
            dimension_semantics=("parallel",),
        ),
    )(X, W, Bias)

    # Product is duplicated in both halves; keep the first dim_h columns and
    # drop batch padding.
    return out_padded[:B, :dim_h]


def mlb_fusion_ref(input_v, input_q, w_v, b_v, w_q, b_q):
    x_v = jnp.tanh(input_v @ w_v + b_v)
    x_q = jnp.tanh(input_q @ w_q + b_q)
    return x_v * x_q


if __name__ == "__main__":
    # opt = {'dim_v': 32, 'dim_q': 48, 'dim_h': 64,
    #        'activation_v': 'tanh', 'activation_q': 'tanh'}
    B, dim_v, dim_q, dim_h = 8, 32, 48, 64

    key = jax.random.PRNGKey(0)
    k1, k2, k3, k4, k5, k6 = jax.random.split(key, 6)

    input_v = jax.random.normal(k1, (B, dim_v), dtype=jnp.float32)
    input_q = jax.random.normal(k2, (B, dim_q), dtype=jnp.float32)

    # Linear parameters, stored pre-transposed: (dim_in, dim_h).
    w_v = jax.random.normal(k3, (dim_v, dim_h), dtype=jnp.float32) * 0.05
    b_v = jax.random.normal(k4, (dim_h,), dtype=jnp.float32) * 0.05
    w_q = jax.random.normal(k5, (dim_q, dim_h), dtype=jnp.float32) * 0.05
    b_q = jax.random.normal(k6, (dim_h,), dtype=jnp.float32) * 0.05

    out = mlb_fusion(input_v, input_q, w_v, b_v, w_q, b_q)
    out = jax.block_until_ready(out)

    ref = mlb_fusion_ref(input_v, input_q, w_v, b_v, w_q, b_q)
    assert out.shape == (B, dim_h)
    assert jnp.allclose(out, ref, atol=1e-5, rtol=1e-5), "mismatch vs reference"

    print("KERNEL_OK")
</pallas_src>

<mosaic_0001>
module attributes {stable_mosaic.version = 11 : i64} {
  func.func @_mlb_fusion_kernel(%arg0: i32, %arg1: memref<8x80xf32, #tpu.memory_space<vmem>>, %arg2: memref<80x128xf32, #tpu.memory_space<vmem>>, %arg3: memref<1x128xf32, #tpu.memory_space<vmem>>, %arg4: memref<8x128xf32, #tpu.memory_space<vmem>>) attributes {dimension_semantics = [#tpu.dimension_semantics<parallel>], iteration_bounds = array<i64: 1>, scalar_prefetch = 0 : i64, scratch_operands = 0 : i64, tpu.core_type = #tpu.core_type<tc>, window_params = [{transform_indices = @transform_0, window_bounds = array<i64: 8, 80>}, {pipeline_mode = #tpu.pipeline_mode<synchronous>, transform_indices = @transform_1, window_bounds = array<i64: 80, 128>}, {pipeline_mode = #tpu.pipeline_mode<synchronous>, transform_indices = @transform_2, window_bounds = array<i64: 1, 128>}, {transform_indices = @transform_3, window_bounds = array<i64: 8, 128>}]} {
    %c0 = arith.constant 0 : index
    %c0_0 = arith.constant 0 : index
    %0 = vector.load %arg1[%c0, %c0_0] : memref<8x80xf32, #tpu.memory_space<vmem>>, vector<8x80xf32>
    %c0_1 = arith.constant 0 : index
    %c0_2 = arith.constant 0 : index
    %1 = vector.load %arg2[%c0_1, %c0_2] : memref<80x128xf32, #tpu.memory_space<vmem>>, vector<80x128xf32>
    %cst = arith.constant dense<0.000000e+00> : vector<8x128xf32>
    %2 = tpu.matmul %0, %1, %cst {dimension_numbers = #tpu.dot_dimension_numbers<[1], [0], [0], [1], [0, 0, 1, 1], [], []>} : vector<8x80xf32>, vector<80x128xf32>, vector<8x128xf32> -> vector<8x128xf32>
    %c0_3 = arith.constant 0 : index
    %c0_4 = arith.constant 0 : index
    %3 = vector.load %arg3[%c0_3, %c0_4] : memref<1x128xf32, #tpu.memory_space<vmem>>, vector<1x128xf32>
    %4 = vector.broadcast %3 : vector<1x128xf32> to vector<8x128xf32>
    %5 = arith.addf %2, %4 : vector<8x128xf32>
    %6 = math.tanh %5 : vector<8x128xf32>
    %c64_i32 = arith.constant 64 : i32
    %7 = tpu.dynamic_rotate %6 by %c64_i32 dim 1 : vector<8x128xf32>, i32 -> vector<8x128xf32>
    %8 = arith.mulf %6, %7 : vector<8x128xf32>
    %c0_5 = arith.constant 0 : index
    %c0_6 = arith.constant 0 : index
    %9 = vector.load %arg4[%c0_5, %c0_6] : memref<8x128xf32, #tpu.memory_space<vmem>>, vector<8x128xf32>
    tpu.vector_store %arg4[%c0_5, %c0_6], %8 {strides = array<i32>} : memref<8x128xf32, #tpu.memory_space<vmem>>, vector<8x128xf32>,
    return
  }
  func.func @transform_0(%arg0: i32) -> (i32, i32) {
    %c0_i32 = arith.constant 0 : i32
    %c0_i32_0 = arith.constant 0 : i32
    return %arg0, %c0_i32 : i32, i32
  }
  func.func @transform_1(%arg0: i32) -> (i32, i32) {
    %c0_i32 = arith.constant 0 : i32
    %c0_i32_0 = arith.constant 0 : i32
    %c0_i32_1 = arith.constant 0 : i32
    return %c0_i32, %c0_i32_0 : i32, i32
  }
  func.func @transform_2(%arg0: i32) -> (i32, i32) {
    %c0_i32 = arith.constant 0 : i32
    %c0_i32_0 = arith.constant 0 : i32
    %c0_i32_1 = arith.constant 0 : i32
    return %c0_i32, %c0_i32_0 : i32, i32
  }
  func.func @transform_3(%arg0: i32) -> (i32, i32) {
    %c0_i32 = arith.constant 0 : i32
    %c0_i32_0 = arith.constant 0 : i32
    return %arg0, %c0_i32 : i32, i32
  }
}

</mosaic_0001>

<llo_original>
// kernel: tpu_custom_call.1
$region0: #{tpu_custom_call.1}
  #allocation0 [shape = 'u32[]', space=smem, size = 0x4, offset = 0x4, fixed_abs, tag = 'smem constant byte address 0x4 - core index']
  #allocation1 [shape = 'u32[144,128]{1,0:T(1,128)}', space=vmem, size = 0x12000, scoped, tag = 'internal scratch']
  %s0 = inlined_call_operand.hbm [shape: f32[8,80], index: 0, kind: input, shape index: {}]
  %s1 = inlined_call_operand.hbm [shape: f32[80,128], index: 1, kind: input, shape index: {}]
  %s2 = inlined_call_operand.vmem [shape: f32[1,128], index: 2, kind: input, shape index: {}]
  %s3 = inlined_call_operand.hbm [shape: f32[8,128], index: 3, kind: output, shape index: {}]
  %s4 = sld [smem:[#allocation0]]
  $region30: #{tpu_custom_call.1} parent=0
    _
  %s6 = ssub.s32 1, %s4
  %s7 = scalar_select 0, %s6, %s4
  $region1: #{tpu_custom_call.1} parent=0
    #allocation2 [shape = 'u8[4096]{0}', space=vmem, size = 0x1000, scoped, tag = 'input window, operand 0, single buffered']
    #allocation3 [shape = 's32[1]{0}', space=sflag, size = 0x4, scoped, tag = 'scoped memory for tpu_custom_call.1']
    #allocation4 [shape = 's32[1]{0}', space=sflag, size = 0x4, scoped, tag = 'scoped memory for tpu_custom_call.1']
    #allocation5 [shape = 'u8[40960]{0}', space=vmem, size = 0xa000, scoped, tag = 'input window, operand 1, single buffered']
    #allocation6 [shape = 's32[1]{0}', space=sflag, size = 0x4, scoped, tag = 'scoped memory for tpu_custom_call.1']
    #allocation7 [shape = 'u8[4096]{0}', space=vmem, size = 0x1000, scoped, tag = 'output window, operand 0, single buffered']
    %8 = vsyncpa [#allocation3], 0
    %9 = vsyncpa [#allocation6], 0
    %10 = vsyncpa [#allocation4], 0
    // Predicated region
    $region2: #{tpu_custom_call.1} parent=1 // pred_check
      _
    $region3: #{tpu_custom_call.1} parent=1 // pred_check_branch
      %12 = sbr.rel (0) target = $region5
    $region4: #{tpu_custom_call.1} parent=1 // pred_region
      %s14 = ssub.s32 128, 128
      %15 = vsyncadd [#allocation3], %s14
      %s17 = sshll.u32 [#allocation2], 4
      %s18 = int_to_ptr.vmem [resolvable:$true] %s17
      %20 = dma.hbm_to_vmem [thread:$0]  %s0, 128, %s18, [#allocation3]
    $region5: #{tpu_custom_call.1} parent=1 // pred_fallthru
      _
    // Predicated region
    $region6: #{tpu_custom_call.1} parent=1 // pred_check
      _
    $region7: #{tpu_custom_call.1} parent=1 // pred_check_branch
      %22 = sbr.rel (0) target = $region9
    $region8: #{tpu_custom_call.1} parent=1 // pred_region
      %s24 = ssub.s32 1280, 1280
      %25 = vsyncadd [#allocation6], %s24
      %s26 = sshll.u32 [#allocation5], 4
      %s27 = int_to_ptr.vmem [resolvable:$true] %s26
      %32 = dma.hbm_to_vmem [thread:$0]  %s1, 1280, %s27, [#allocation6], 128, 128, 8
    $region9: #{tpu_custom_call.1} parent=1 // pred_fallthru
      _
    // Predicated region
    $region10: #{tpu_custom_call.1} parent=1 // pred_check
      _
    $region11: #{tpu_custom_call.1} parent=1 // pred_check_branch
      %34 = sbr.rel (0) target = $region13
    $region12: #{tpu_custom_call.1} parent=1 // pred_region
      _
    $region13: #{tpu_custom_call.1} parent=1 // pred_fallthru
      _
    // Predicated region
    $region14: #{tpu_custom_call.1} parent=1 // pred_check
      _
    $region15: #{tpu_custom_call.1} parent=1 // pred_check_branch
      %36 = sbr.rel (0) target = $region17
    $region16: #{tpu_custom_call.1} parent=1 // pred_region
      %37 = dma.done [#allocation3], 128
    $region17: #{tpu_custom_call.1} parent=1 // pred_fallthru
      _
    // Predicated region
    $region18: #{tpu_custom_call.1} parent=1 // pred_check
      _
    $region19: #{tpu_custom_call.1} parent=1 // pred_check_branch
      %39 = sbr.rel (0) target = $region21
    $region20: #{tpu_custom_call.1} parent=1 // pred_region
      %40 = dma.done [#allocation6], 1280
    $region21: #{tpu_custom_call.1} parent=1 // pred_fallthru
      _
    %v41 = vld [vmem:[#allocation2] sm:$0xff]
    %v42 = vld [vmem:[#allocation5] sm:$0xff]
    %v43 = vld [vmem:[#allocation5 + $0x8] sm:$0xff]
    %v44 = vld [vmem:[#allocation5 + $0x10] sm:$0xff]
    %v45 = vld [vmem:[#allocation5 + $0x18] sm:$0xff]
    %v46 = vld [vmem:[#allocation5 + $0x20] sm:$0xff]
    %v47 = vld [vmem:[#allocation5 + $0x28] sm:$0xff]
    %v48 = vld [vmem:[#allocation5 + $0x30] sm:$0xff]
    %v49 = vld [vmem:[#allocation5 + $0x38] sm:$0xff]
    %v50 = vld [vmem:[#allocation5 + $0x40] sm:$0xff]
    %v51 = vld [vmem:[#allocation5 + $0x48] sm:$0xff]
    %v52 = vld [vmem:[%s2] sm:$0x1]
    %v54 = vlaneseq
    %v55 = vshrl.u32 %v54, 7
    %v56 = vsub.s32 0, %v55
    %v57 = vrot.slane %v52, %v56
    %vm59 = vcmask 654336
    %v61 = vsel %vm59, %v41, 0
    %63 = vmatprep.subr.mxu0 0.0
    %64 = vmatpush1.msra.mxu0 0.0
    %65 = vmatprep.subr.mxu0 0.0
    %66 = vmatpush1.msra.mxu0 0.0
    %67 = vmatprep.subr.mxu0 0.0
    %68 = vmatpush1.msra.mxu0 0.0
    %69 = vmatprep.subr.mxu0 0.0
    %70 = vmatpush1.msra.mxu0 0.0
    %71 = vmatprep.subr.mxu0 0.0
    %72 = vmatpush1.msra.mxu0 0.0
    %73 = vmatprep.subr.mxu0 0.0
    %74 = vmatpush1.msra.mxu0 0.0
    %75 = vmatprep.subr.mxu0 0.0
    %76 = vmatpush1.msra.mxu0 %v51
    %77 = vmatprep.subr.mxu0 0.0
    %78 = vmatpush1.msra.mxu0 %v50
    %79 = vmatprep.subr.mxu0 0.0
    %80 = vmatpush1.msra.mxu0 %v49
    %81 = vmatprep.subr.mxu0 0.0
    %82 = vmatpush1.msra.mxu0 %v48
    %83 = vmatprep.subr.mxu0 0.0
    %84 = vmatpush1.msra.mxu0 %v47
    %85 = vmatprep.subr.mxu0 0.0
    %86 = vmatpush1.msra.mxu0 %v46
    %87 = vmatprep.subr.mxu0 0.0
    %88 = vmatpush1.msra.mxu0 %v45
    %89 = vmatprep.subr.mxu0 0.0
    %90 = vmatpush1.msra.mxu0 %v44
    %91 = vmatprep.subr.mxu0 0.0
    %92 = vmatpush1.msra.mxu0 %v43
    %93 = vmatprep.subr.mxu0 0.0
    %94 = vmatpush1.msra.mxu0 %v42
    %95 = vmatprep.subr.mxu0 0.0
    %96 = vmatpush2.msra.mxu0 0.0
    %97 = vmatprep.subr.mxu0 0.0
    %98 = vmatpush2.msra.mxu0 0.0
    %99 = vmatprep.subr.mxu0 0.0
    %100 = vmatpush2.msra.mxu0 0.0
    %101 = vmatprep.subr.mxu0 0.0
    %102 = vmatpush2.msra.mxu0 0.0
    %103 = vmatprep.subr.mxu0 0.0
    %104 = vmatpush2.msra.mxu0 0.0
    %105 = vmatprep.subr.mxu0 0.0
    %106 = vmatpush2.msra.mxu0 0.0
    %107 = vmatprep.subr.mxu0 0.0
    %108 = vmatpush2.msra.mxu0 0.0
    %109 = vmatprep.subr.mxu0 0.0
    %110 = vmatpush2.msra.mxu0 0.0
    %111 = vmatprep.subr.mxu0 0.0
    %112 = vmatpush2.msra.mxu0 0.0
    %113 = vmatprep.subr.mxu0 0.0
    %114 = vmatpush2.msra.mxu0 0.0
    %115 = vmatprep.subr.mxu0 0.0
    %116 = vmatpush2.msra.mxu0 0.0
    %117 = vmatprep.subr.mxu0 0.0
    %118 = vmatpush2.msra.mxu0 0.0
    %119 = vmatprep.subr.mxu0 0.0
    %120 = vmatpush2.msra.mxu0 0.0
    %121 = vmatprep.subr.mxu0 0.0
    %122 = vmatpush2.msra.mxu0 0.0
    %123 = vmatprep.subr.mxu0 0.0
    %124 = vmatpush2.msra.mxu0 0.0
    %125 = vmatprep.subr.mxu0 0.0
    %126 = vmatpush2.msra.mxu0 0.0
    %127 = vmatprep.mubr.f32.mxu0 0.0
    %128 = vmatmul.mubr.f32.gmra.mxu0 %v61
    %v129 = vpop.f32.mrf.mxu0
    %v130 = vadd.f32 %v57, %v129
    %v131 = vpop.f32.mrf.mxu0
    %132 = vdwg.mxu0
    %v133 = vtanh.pop %v130
    %134 = vrot.lane.b32.xlu0 %v133, 64
    %v135 = vpop.permute.xlu0 %134
    %v136 = vmul.f32 %v133, %v135
    %137 = vst [vmem:[#allocation7] sm:$0xff] %v136
    // Predicated region
    $region22: #{tpu_custom_call.1} parent=1 // pred_check
      _
    $region23: #{tpu_custom_call.1} parent=1 // pred_check_branch
      %139 = sbr.rel (0) target = $region25
    $region24: #{tpu_custom_call.1} parent=1 // pred_region
      %s141 = ssub.s32 128, 128
      %142 = vsyncadd [#allocation4], %s141
      %s144 = sshll.u32 [#allocation7], 4
      %s145 = int_to_ptr.vmem [resolvable:$true] %s144
      %147 = dma.vmem_to_hbm [thread:$0]  %s145, 128, %s3, [#allocation4]
    $region25: #{tpu_custom_call.1} parent=1 // pred_fallthru
      _
    // Predicated region
    $region26: #{tpu_custom_call.1} parent=1 // pred_check
      _
    $region27: #{tpu_custom_call.1} parent=1 // pred_check_branch
      %149 = sbr.rel (0) target = $region29
    $region28: #{tpu_custom_call.1} parent=1 // pred_region
      %150 = dma.done [#allocation4], 128
    $region29: #{tpu_custom_call.1} parent=1 // pred_fallthru
      _
    %151 = vsyncpa [#allocation3], 1
    %152 = vsyncpa [#allocation6], 1
    %153 = vsyncpa [#allocation4], 1

</llo_original>
